<compile_context>
chip_gen: v7x
topology: tpu7x:2x2x1
jax: 0.10.0
libtpu: 0.0.40
codegen_flags: <defaults>
</compile_context>

<pallas_src>
import functools

import jax
import jax.numpy as jnp
from jax.experimental import pallas as pl
from jax.experimental.pallas import tpu as pltpu


def _round_up(x, m):
    return ((x + m - 1) // m) * m


def _choose_tile_n(n, c):
    # Keep the logits tile <= ~2 MiB so (2 pipeline buffers + the (tile, C)
    # elementwise temporaries) stay well inside scoped VMEM on every
    # generation (v7x has only 64 MiB physical / 32 MiB default scoped).
    budget_rows = max(8, (2 * 1024 * 1024) // (4 * max(c, 1)))
    tile = min(_round_up(n, 8), (budget_rows // 8) * 8, 2048)
    return max(8, tile)


def _focal_loss_kernel(*refs, gamma, n, tile_n, use_alpha):
    if use_alpha:
        x_ref, t_ref, a_ref, o_ref = refs
    else:
        x_ref, t_ref, o_ref = refs

    pid = pl.program_id(0)

    x = x_ref[...].astype(jnp.float32)                       # (TILE_N, C)
    t = t_ref[...]                                           # (TILE_N, 1) int32
    tn, c = x.shape

    # one-hot class mask (scatter_(1, ids, 1.0) equivalent)
    col = jax.lax.broadcasted_iota(jnp.int32, (tn, c), 1)
    mask = col == t                                          # (TILE_N, C) bool

    # log-sum-exp gather of the target log-prob (no (N,C) divide, no log(0))
    m = jnp.max(x, axis=-1, keepdims=True)                   # (TILE_N, 1)
    e = jnp.exp(x - m)                                       # (TILE_N, C)  EUP
    denom = jnp.sum(e, axis=-1, keepdims=True)               # (TILE_N, 1)
    x_t = jnp.sum(jnp.where(mask, x, 0.0), axis=-1, keepdims=True)
    log_p = (x_t - m) - jnp.log(denom)                       # (TILE_N, 1)
    probs = jnp.exp(log_p)                                   # (TILE_N, 1)

    # TODO(synk): targets outside [0, C) silently give probs=exp(-m-log(denom))
    # instead of raising like torch gather would.

    d = 1.0 - probs
    if gamma == 2:
        focal = d * d                                        # no EUP pow
    elif isinstance(gamma, int) and gamma >= 0:
        focal = jax.lax.integer_pow(d, gamma)
    else:
        focal = d ** gamma

    row_loss = -focal * log_p                                # (TILE_N, 1)

    if use_alpha:
        at = jnp.sum(jnp.where(mask, a_ref[...], 0.0), axis=-1, keepdims=True)
        row_loss = at * row_loss

    # mask padded rows of the last (ragged) tile; select is NaN-safe
    row = jax.lax.broadcasted_iota(jnp.int32, (tn, 1), 0) + pid * tile_n
    row_loss = jnp.where(row < n, row_loss, 0.0)

    # lane-dense per-tile partial sum block (summed + averaged in the wrapper)
    o_ref[...] = jnp.broadcast_to(jnp.sum(row_loss), o_ref.shape)


def focal_loss1(inputs, targets, alpha=None, gamma=2, size_average=True, tile_n=None):
    """inputs: (N, C) float logits; targets: (N,) int class ids. Returns scalar f32."""
    inputs = jnp.asarray(inputs)
    n, c = inputs.shape
    targets_2d = jnp.asarray(targets).reshape(n, 1).astype(jnp.int32)

    tile = _choose_tile_n(n, c) if tile_n is None else int(tile_n)
    assert tile % 8 == 0, "tile_n must be a multiple of 8 (f32 sublane)"
    num_tiles = pl.cdiv(n, tile)

    use_alpha = alpha is not None
    args = [inputs, targets_2d]
    in_specs = [
        pl.BlockSpec((tile, c), lambda i: (i, 0)),            # logits tile
        pl.BlockSpec((tile, 1), lambda i: (i, 0)),            # targets tile
    ]
    if use_alpha:
        alpha_row = jnp.asarray(alpha, dtype=jnp.float32).reshape(1, c)
        args.append(alpha_row)
        in_specs.append(pl.BlockSpec((1, c), lambda i: (0, 0)))  # resident alpha

    kernel = functools.partial(
        _focal_loss_kernel, gamma=gamma, n=n, tile_n=tile, use_alpha=use_alpha
    )

    partials = pl.pallas_call(
        kernel,
        out_shape=jax.ShapeDtypeStruct((num_tiles, 8, 128), jnp.float32),
        grid=(num_tiles,),
        in_specs=in_specs,
        out_specs=pl.BlockSpec((1, 8, 128), lambda i: (i, 0, 0)),
        compiler_params=pltpu.CompilerParams(
            dimension_semantics=("parallel",),        # tiles independent -> megacore on v7x
            vmem_limit_bytes=48 * 1024 * 1024,        # above v5e 16 MiB default, < v7x 64 MiB
        ),
        cost_estimate=pl.CostEstimate(
            flops=8 * n * c,
            transcendentals=n * c + 2 * n,
            bytes_accessed=4 * n * c + 4 * n + 4 * c,
        ),
    )(*args)

    total = jnp.sum(partials[:, 0, 0])
    return total / jnp.float32(n) if size_average else total


def _reference(inputs, targets, alpha, gamma):
    # pure-JAX reference of FocalLoss1.forward
    p = jax.nn.softmax(inputs.astype(jnp.float32), axis=-1)
    onehot = jax.nn.one_hot(targets, inputs.shape[1], dtype=jnp.float32)
    probs = jnp.sum(p * onehot, axis=1)
    log_p = jnp.log(probs)
    loss = -((1.0 - probs) ** gamma) * log_p
    if alpha is not None:
        loss = jnp.asarray(alpha, jnp.float32).reshape(-1)[targets] * loss
    return loss.mean()


if __name__ == "__main__":
    key = jax.random.PRNGKey(0)
    k1, k2, k3, k4, k5 = jax.random.split(key, 5)

    # case 1: module defaults (alpha=ones -> gather skipped), single tile
    N1, C1 = 16, 7
    x1 = jax.random.normal(k1, (N1, C1), dtype=jnp.float32)
    t1 = jax.random.randint(k2, (N1,), 0, C1, dtype=jnp.int32)
    out1 = jax.block_until_ready(focal_loss1(x1, t1, alpha=None, gamma=2))
    ref1 = _reference(x1, t1, None, 2)
    assert jnp.allclose(out1, ref1, atol=1e-5, rtol=1e-5), (out1, ref1)

    # case 2: multi-tile grid with a ragged last tile + explicit per-class alpha
    N2, C2 = 40, 10
    x2 = jax.random.normal(k3, (N2, C2), dtype=jnp.float32)
    t2 = jax.random.randint(k4, (N2,), 0, C2, dtype=jnp.int32)
    a2 = jax.random.uniform(k5, (C2,), dtype=jnp.float32, minval=0.5, maxval=2.0)
    out2 = jax.block_until_ready(focal_loss1(x2, t2, alpha=a2, gamma=2, tile_n=16))
    ref2 = _reference(x2, t2, a2, 2)
    assert jnp.allclose(out2, ref2, atol=1e-5, rtol=1e-5), (out2, ref2)

    # case 3: non-default integer gamma (integer_pow path), ragged tiles, no alpha
    out3 = jax.block_until_ready(focal_loss1(x2, t2, alpha=None, gamma=3, tile_n=16))
    ref3 = _reference(x2, t2, None, 3)
    assert jnp.allclose(out3, ref3, atol=1e-5, rtol=1e-5), (out3, ref3)

    print("KERNEL_OK")
</pallas_src>

<mosaic_0001>
module attributes {stable_mosaic.version = 11 : i64} {
  func.func @_focal_loss_kernel(%arg0: i32, %arg1: memref<16x7xf32, #tpu.memory_space<vmem>>, %arg2: memref<16x1xi32, #tpu.memory_space<vmem>>, %arg3: memref<1x8x128xf32, #tpu.memory_space<vmem>>) attributes {dimension_semantics = [#tpu.dimension_semantics<parallel>], iteration_bounds = array<i64: 1>, scalar_prefetch = 0 : i64, scratch_operands = 0 : i64, tpu.core_type = #tpu.core_type<tc>, window_params = [{transform_indices = @transform_0, window_bounds = array<i64: 16, 7>}, {transform_indices = @transform_1, window_bounds = array<i64: 16, 1>}, {transform_indices = @transform_2, window_bounds = array<i64: 1, 8, 128>}]} {
    %c0 = arith.constant 0 : index
    %c0_0 = arith.constant 0 : index
    %0 = vector.load %arg1[%c0, %c0_0] : memref<16x7xf32, #tpu.memory_space<vmem>>, vector<16x7xf32>
    %c0_1 = arith.constant 0 : index
    %c0_2 = arith.constant 0 : index
    %1 = vector.load %arg2[%c0_1, %c0_2] : memref<16x1xi32, #tpu.memory_space<vmem>>, vector<16x1xi32>
    %2 = tpu.iota {dimensions = array<i32: 1>} : vector<16x7xi32>
    %3 = vector.broadcast %1 : vector<16x1xi32> to vector<16x7xi32>
    %4 = arith.cmpi eq, %2, %3 : vector<16x7xi32>
    %cst = arith.constant dense<0xFF800000> : vector<16xf32>
    %5 = vector.multi_reduction <maximumf>, %0, %cst [1] : vector<16x7xf32> to vector<16xf32>
    %6 = vector.shape_cast %5 : vector<16xf32> to vector<16x1xf32>
    %7 = vector.broadcast %6 : vector<16x1xf32> to vector<16x7xf32>
    %8 = arith.subf %0, %7 : vector<16x7xf32>
    %9 = math.exp %8 : vector<16x7xf32>
    %cst_3 = arith.constant dense<0.000000e+00> : vector<16xf32>
    %10 = vector.multi_reduction <add>, %9, %cst_3 [1] : vector<16x7xf32> to vector<16xf32>
    %11 = vector.shape_cast %10 : vector<16xf32> to vector<16x1xf32>
    %cst_4 = arith.constant 0.000000e+00 : f32
    %12 = vector.broadcast %cst_4 : f32 to vector<16x7xf32>
    %13 = arith.select %4, %0, %12 : vector<16x7xi1>, vector<16x7xf32>
    %cst_5 = arith.constant dense<0.000000e+00> : vector<16xf32>
    %14 = vector.multi_reduction <add>, %13, %cst_5 [1] : vector<16x7xf32> to vector<16xf32>
    %15 = vector.shape_cast %14 : vector<16xf32> to vector<16x1xf32>
    %16 = arith.subf %15, %6 : vector<16x1xf32>
    %17 = math.log %11 : vector<16x1xf32>
    %18 = arith.subf %16, %17 : vector<16x1xf32>
    %19 = math.exp %18 : vector<16x1xf32>
    %cst_6 = arith.constant 1.000000e+00 : f32
    %20 = vector.broadcast %cst_6 : f32 to vector<16x1xf32>
    %21 = arith.subf %20, %19 : vector<16x1xf32>
    %22 = arith.mulf %21, %21 : vector<16x1xf32>
    %cst_7 = arith.constant 0.000000e+00 : f32
    %23 = vector.broadcast %cst_7 : f32 to vector<16x1xf32>
    %24 = arith.subf %23, %22 : vector<16x1xf32>
    %25 = arith.mulf %24, %18 : vector<16x1xf32>
    %26 = tpu.iota {dimensions = array<i32: 0>} : vector<16x1xi32>
    %c16_i32 = arith.constant 16 : i32
    %27 = arith.muli %arg0, %c16_i32 : i32
    %28 = vector.broadcast %27 : i32 to vector<16x1xi32>
    %29 = arith.addi %26, %28 : vector<16x1xi32>
    %c16_i32_8 = arith.constant 16 : i32
    %30 = vector.broadcast %c16_i32_8 : i32 to vector<16x1xi32>
    %31 = arith.cmpi slt, %29, %30 : vector<16x1xi32>
    %cst_9 = arith.constant 0.000000e+00 : f32
    %32 = vector.broadcast %cst_9 : f32 to vector<16x1xf32>
    %33 = arith.select %31, %25, %32 : vector<16x1xi1>, vector<16x1xf32>
    %34 = vector.shape_cast %33 : vector<16x1xf32> to vector<1x16x1xf32>
    %cst_10 = arith.constant dense<0.000000e+00> : vector<1xf32>
    %35 = vector.multi_reduction <add>, %34, %cst_10 [1, 2] : vector<1x16x1xf32> to vector<1xf32>
    %36 = vector.shape_cast %35 : vector<1xf32> to vector<1x1x1xf32>
    %37 = vector.extract %36[0, 0, 0] : f32 from vector<1x1x1xf32>
    %38 = vector.broadcast %37 : f32 to vector<1x8x128xf32>
    %c0_11 = arith.constant 0 : index
    %c0_12 = arith.constant 0 : index
    %c0_13 = arith.constant 0 : index
    %39 = vector.load %arg3[%c0_11, %c0_12, %c0_13] : memref<1x8x128xf32, #tpu.memory_space<vmem>>, vector<1x8x128xf32>
    tpu.vector_store %arg3[%c0_11, %c0_12, %c0_13], %38 {strides = array<i32>} : memref<1x8x128xf32, #tpu.memory_space<vmem>>, vector<1x8x128xf32>,
    return
  }
  func.func @transform_0(%arg0: i32) -> (i32, i32) {
    %c0_i32 = arith.constant 0 : i32
    %c0_i32_0 = arith.constant 0 : i32
    return %arg0, %c0_i32 : i32, i32
  }
  func.func @transform_1(%arg0: i32) -> (i32, i32) {
    %c0_i32 = arith.constant 0 : i32
    %c0_i32_0 = arith.constant 0 : i32
    return %arg0, %c0_i32 : i32, i32
  }
  func.func @transform_2(%arg0: i32) -> (i32, i32, i32) {
    %c0_i32 = arith.constant 0 : i32
    %c0_i32_0 = arith.constant 0 : i32
    %c0_i32_1 = arith.constant 0 : i32
    return %arg0, %c0_i32, %c0_i32_0 : i32, i32, i32
  }
}

</mosaic_0001>

<llo_original>
// kernel: tpu_custom_call.1
$region0: #{tpu_custom_call.1}
  #allocation0 [shape = 'u32[]', space=smem, size = 0x4, offset = 0x4, fixed_abs, tag = 'smem constant byte address 0x4 - core index']
  #allocation1 [shape = 'u32[144,128]{1,0:T(1,128)}', space=vmem, size = 0x12000, scoped, tag = 'internal scratch']
  %s0 = inlined_call_operand.vmem [shape: f32[16,7], index: 0, kind: input, shape index: {}]
  %s1 = inlined_call_operand.vmem [shape: s32[16,1], index: 1, kind: input, shape index: {}]
  %s2 = inlined_call_operand.hbm [shape: f32[1,8,128], index: 2, kind: output, shape index: {}]
  %s3 = sld [smem:[#allocation0]]
  $region18: #{tpu_custom_call.1} parent=0
    _
  %s5 = ssub.s32 1, %s3
  %s6 = scalar_select 0, %s5, %s3
  $region1: #{tpu_custom_call.1} parent=0
    #allocation2 [shape = 'u8[4096]{0}', space=vmem, size = 0x1000, scoped, tag = 'output window, operand 0, single buffered']
    #allocation3 [shape = 's32[1]{0}', space=sflag, size = 0x4, scoped, tag = 'scoped memory for tpu_custom_call.1']
    %7 = vsyncpa [#allocation3], 0
    // Predicated region
    $region2: #{tpu_custom_call.1} parent=1 // pred_check
      _
    $region3: #{tpu_custom_call.1} parent=1 // pred_check_branch
      %9 = sbr.rel (0) target = $region5
    $region4: #{tpu_custom_call.1} parent=1 // pred_region
      _
    $region5: #{tpu_custom_call.1} parent=1 // pred_fallthru
      _
    // Predicated region
    $region6: #{tpu_custom_call.1} parent=1 // pred_check
      _
    $region7: #{tpu_custom_call.1} parent=1 // pred_check_branch
      %11 = sbr.rel (0) target = $region9
    $region8: #{tpu_custom_call.1} parent=1 // pred_region
      _
    $region9: #{tpu_custom_call.1} parent=1 // pred_fallthru
      _
    %v12 = vld [vmem:[%s0] sm:$0xff]
    %v13 = vld [vmem:[%s0 + $0x8] sm:$0xff]
    %v14 = vld [vmem:[%s1] sm:$0xff]
    %v15 = vld [vmem:[%s1 + $0x8] sm:$0xff]
    %v16 = vlaneseq
    %v17 = vand.u32 %v16, 127
    %18 = vset.pattern.permute.xlu0 0
    %19 = vperm.xlu0 %18, %v14
    %v20 = vpop.permute.xlu0 %19
    %21 = vset.pattern.permute.xlu0 0
    %22 = vperm.xlu0 %21, %v15
    %v23 = vpop.permute.xlu0 %22
    %vm24 = vcmp.eq.s32.totalorder %v17, %v20
    %vm25 = vcmp.eq.s32.totalorder %v17, %v23
    %vm26 = vcmask 56320
    %v27 = vsel %vm26, %v12, -inf
    %28 = vmax.xlane.f32.xlu0 %v27
    %v29 = vpop.xlane.xlu0 %28
    %v30 = vsel %vm26, %v13, -inf
    %31 = vmax.xlane.f32.xlu0 %v30
    %v32 = vpop.xlane.xlu0 %31
    %v33 = vsub.f32 %v12, %v29
    %v34 = vsub.f32 %v13, %v32
    %v35 = vmul.f32 %v33, 1.442695
    %v36 = vpow.pop %v35
    %v37 = vmul.f32 %v34, 1.442695
    %v38 = vpow.pop %v37
    %v39 = vsel %vm26, %v36, 0.0
    %40 = vadd.xlane.f32.xlu0 %v39
    %v41 = vpop.xlane.xlu0 %40
    %v42 = vsel %vm26, %v38, 0.0
    %43 = vadd.xlane.f32.xlu0 %v42
    %v44 = vpop.xlane.xlu0 %43
    %v45 = vsel %vm24, %v12, 0.0
    %v46 = vsel %vm25, %v13, 0.0
    %v47 = vsel %vm26, %v45, 0.0
    %48 = vadd.xlane.f32.xlu0 %v47
    %v49 = vpop.xlane.xlu0 %48
    %v50 = vsel %vm26, %v46, 0.0
    %51 = vadd.xlane.f32.xlu0 %v50
    %v52 = vpop.xlane.xlu0 %51
    %v53 = vsub.f32 %v49, %v29
    %v54 = vsub.f32 %v52, %v32
    %v55 = vlog2.pop %v41
    %v56 = vmul.f32 %v55, 0.6931472
    %v57 = vlog2.pop %v44
    %v58 = vmul.f32 %v57, 0.6931472
    %v59 = vsub.f32 %v53, %v56
    %v60 = vsub.f32 %v54, %v58
    %v61 = vmul.f32 %v59, 1.442695
    %v62 = vpow.pop %v61
    %v63 = vmul.f32 %v60, 1.442695
    %v64 = vpow.pop %v63
    %v65 = vsub.f32 1.0, %v62
    %v66 = vsub.f32 1.0, %v64
    %v67 = vmul.f32 %v65, %v65
    %v68 = vmul.f32 %v66, %v66
    %v69 = vsub.f32 0.0, %v67
    %v70 = vsub.f32 0.0, %v68
    %v71 = vmul.f32 %v69, %v59
    %v72 = vmul.f32 %v70, %v60
    %v73 = vlaneseq
    %v74 = vshrl.u32 %v73, 7
    %v75 = vadd.s32 %v74, 8
    %s76 = smul.u32 0, 16
    %v77 = vstv %s76
    %v78 = vadd.s32 %v74, %v77
    %v79 = vadd.s32 %v75, %v77
    %vm80 = vcmp.lt.s32.totalorder %v78, 16
    %vm81 = vcmp.lt.s32.totalorder %v79, 16
    %v82 = vsel %vm80, %v71, 0.0
    %v83 = vsel %vm81, %v72, 0.0
    %vm84 = vcmask 7168
    %v85 = vsel %vm84, %v82, 0.0
    %v86 = vsel %vm84, %v83, 0.0
    %v87 = vadd.f32 %v85, %v86
    %88 = vadd.xlane.f32.xlu0 %v87
    %v89 = vpop.xlane.xlu0 %88
    %v90 = vrot.slane %v89, 4
    %v91 = vadd.f32 %v89, %v90
    %v92 = vrot.slane %v91, 2
    %v93 = vadd.f32 %v91, %v92
    %v94 = vrot.slane %v93, 1
    %v95 = vadd.f32 %v93, %v94
    %s96 = vtos %v95
    %v97 = vstv %s96
    %98 = vst [vmem:[#allocation2] sm:$0xff] %v97
    // Predicated region
    $region10: #{tpu_custom_call.1} parent=1 // pred_check
      _
    $region11: #{tpu_custom_call.1} parent=1 // pred_check_branch
      %100 = sbr.rel (0) target = $region13
    $region12: #{tpu_custom_call.1} parent=1 // pred_region
      %s102 = ssub.s32 128, 128
      %103 = vsyncadd [#allocation3], %s102
      %s105 = sshll.u32 [#allocation2], 4
      %s106 = int_to_ptr.vmem [resolvable:$true] %s105
      %108 = dma.vmem_to_hbm [thread:$0]  %s106, 128, %s2, [#allocation3]
    $region13: #{tpu_custom_call.1} parent=1 // pred_fallthru
      _
    // Predicated region
    $region14: #{tpu_custom_call.1} parent=1 // pred_check
      _
    $region15: #{tpu_custom_call.1} parent=1 // pred_check_branch
      %110 = sbr.rel (0) target = $region17
    $region16: #{tpu_custom_call.1} parent=1 // pred_region
      %111 = dma.done [#allocation3], 128
    $region17: #{tpu_custom_call.1} parent=1 // pred_fallthru
      _
    %112 = vsyncpa [#allocation3], 1

</llo_original>
